<compile_context>
chip_gen: v7x
topology: tpu7x:2x2x1
jax: 0.10.0
libtpu: 0.0.40
codegen_flags: <defaults>
</compile_context>

<pallas_src>
import jax
import jax.numpy as jnp
from jax import lax
from jax.experimental import pallas as pl
from jax.experimental.pallas import tpu as pltpu

LANE = 128                 # TPU lane width; batch lives on lanes inside the kernel
TB_MAX = 16 * 1024         # rows per grid step (double-buffered VMEM ~18 MiB at 16K)
MIN_GRID_STEPS = 4         # keep >=2 blocks per TensorCore on dual-TC chips (v7x)
SMALL_BATCH = 1024         # below this, pallas_call fixed cost dominates -> plain XLA
VMEM_LIMIT_BYTES = 32 * 1024 * 1024   # raise v5e's 16 MiB scoped default; <= physical everywhere


def policy_net_kernel(x_ref, w1_ref, b1_ref, w2_ref, b2_ref, w3_ref, b3_ref, out_ref):
    # x_ref: (tb, 16) batch-major tile read directly from the (B, 16) HBM array.
    # Weights keep PyTorch (out, in) layout; biases are (out, 1) for lane broadcast.
    x = x_ref[...]                                                        # (tb, 16)

    # fc1 + ReLU: 'nt' matmul (contract last axis of both) -> (8, tb),
    # i.e. feature-major with batch on lanes, no explicit transpose needed.
    h1 = lax.dot_general(
        w1_ref[...], x,
        dimension_numbers=(((1,), (1,)), ((), ())),
        preferred_element_type=jnp.float32,
    ) + b1_ref[...]
    h1 = jnp.maximum(h1, 0.0)                                             # (8, tb)

    # fc2 + ReLU
    h2 = jnp.dot(w2_ref[...], h1, preferred_element_type=jnp.float32) + b2_ref[...]
    h2 = jnp.maximum(h2, 0.0)                                             # (8, tb)

    # fc3 (no activation) -> actionMean, feature-major: lane-dense stores.
    out_ref[...] = (
        jnp.dot(w3_ref[...], h2, preferred_element_type=jnp.float32) + b3_ref[...]
    )                                                                     # (4, tb)


def _round_up(n, m):
    return ((n + m - 1) // m) * m


def _pick_tile(B):
    # Lane-aligned tile, capped at TB_MAX, sized so the grid has >= MIN_GRID_STEPS
    # blocks when the batch allows it (dual-TC sharding + pipeline overlap).
    tb = _round_up(pl.cdiv(B, MIN_GRID_STEPS), LANE)
    return max(LANE, min(TB_MAX, tb))


def _flatten_input(x):
    x = jnp.asarray(x, dtype=jnp.float32)
    if x.ndim == 1:
        x = x[None, :]
    x = x.reshape(x.shape[0], -1)                       # x.view(-1, num_flat_features)
    assert x.shape[1] == 16, f"expected 16 flat features, got {x.shape[1]}"
    return x


def policy_net_pallas(x2d, params):
    """Always runs the Pallas kernel. x2d: (B, 16) f32 -> (B, 4) f32."""
    B = x2d.shape[0]
    w1, b1, w2, b2, w3, b3 = params                     # (out, in) / (out,)
    b1c, b2c, b3c = b1[:, None], b2[:, None], b3[:, None]

    tb = _pick_tile(B)
    n_tiles = pl.cdiv(B, tb)                            # ragged tail handled by Pallas

    def resident(a):
        # Whole array in VMEM, same block every grid step (no re-DMA).
        return pl.BlockSpec(a.shape, lambda i: (0,) * a.ndim)

    weight_bytes = sum(int(a.size) * 4 for a in (w1, b1, w2, b2, w3, b3))
    cost = pl.CostEstimate(
        flops=2 * B * (16 * 8 + 8 * 8 + 8 * 4),
        transcendentals=0,
        bytes_accessed=B * (16 + 4) * 4 + weight_bytes,
    )

    out_fm = pl.pallas_call(
        policy_net_kernel,
        out_shape=jax.ShapeDtypeStruct((4, B), jnp.float32),
        grid=(n_tiles,),
        in_specs=[
            pl.BlockSpec((tb, 16), lambda i: (i, 0)),   # batch-major x tile, no wrapper transpose
            resident(w1), resident(b1c),
            resident(w2), resident(b2c),
            resident(w3), resident(b3c),
        ],
        out_specs=pl.BlockSpec((4, tb), lambda i: (0, i)),   # lane-dense feature-major output
        compiler_params=pltpu.CompilerParams(
            dimension_semantics=("parallel",),
            vmem_limit_bytes=VMEM_LIMIT_BYTES,
        ),
        cost_estimate=cost,
    )(x2d, w1, b1c, w2, b2c, w3, b3c)

    # Only remaining layout cost: small (4, B) -> (B, 4) transpose for PyTorch layout.
    return out_fm.T


def policy_net_reference(x2d, params):
    """Pure-JAX reference of the PyTorch forward (also the small-batch fast path)."""
    w1, b1, w2, b2, w3, b3 = params
    h = jax.nn.relu(x2d @ w1.T + b1)
    h = jax.nn.relu(h @ w2.T + b2)
    return h @ w3.T + b3


def policy_net_forward(x, params, force_pallas=False):
    x2d = _flatten_input(x)
    B = x2d.shape[0]
    if B < SMALL_BATCH and not force_pallas:
        # Small-batch fallback: kernel fixed cost dominates for inference-sized calls.
        return policy_net_reference(x2d, params)
    return policy_net_pallas(x2d, params)


def init_params(key):
    """Deterministic init mimicking nn.Linear default (uniform(-1/sqrt(fan_in), +))."""
    def linear(key, fan_in, fan_out):
        kw, kb = jax.random.split(key)
        bound = 1.0 / jnp.sqrt(fan_in)
        w = jax.random.uniform(kw, (fan_out, fan_in), jnp.float32, -bound, bound)
        b = jax.random.uniform(kb, (fan_out,), jnp.float32, -bound, bound)
        return w, b

    k1, k2, k3 = jax.random.split(key, 3)
    w1, b1 = linear(k1, 16, 8)
    w2, b2 = linear(k2, 8, 8)
    w3, b3 = linear(k3, 8, 4)
    return (w1, b1, w2, b2, w3, b3)


if __name__ == "__main__":
    key = jax.random.PRNGKey(0)
    k_params, k_x1, k_x2 = jax.random.split(key, 3)

    params = init_params(k_params)

    # Small example mirroring the PyTorch x.view(-1, 16) path: batch=2, shaped (2,4,4).
    x_small = jax.random.normal(k_x1, (2, 4, 4), dtype=jnp.float32)
    out_small = jax.block_until_ready(policy_net_forward(x_small, params))
    ref_small = policy_net_reference(_flatten_input(x_small), params)
    assert out_small.shape == (2, 4)
    assert jnp.allclose(out_small, ref_small, atol=1e-5, rtol=1e-5)

    # Exercise the Pallas kernel itself on a batch with a ragged tail
    # (B not a multiple of the tile, >= SMALL_BATCH so the kernel path is taken).
    B_big = 2 * 1024 + 77
    x_big = jax.random.normal(k_x2, (B_big, 16), dtype=jnp.float32)
    out_big = jax.block_until_ready(policy_net_forward(x_big, params))
    ref_big = policy_net_reference(x_big, params)
    assert out_big.shape == (B_big, 4)
    assert jnp.allclose(out_big, ref_big, atol=1e-5, rtol=1e-5)

    print("KERNEL_OK")
</pallas_src>

<mosaic_0001>
module attributes {stable_mosaic.version = 11 : i64} {
  func.func @policy_net_kernel(%arg0: i32, %arg1: memref<640x16xf32, #tpu.memory_space<vmem>>, %arg2: memref<8x16xf32, #tpu.memory_space<vmem>>, %arg3: memref<8x1xf32, #tpu.memory_space<vmem>>, %arg4: memref<8x8xf32, #tpu.memory_space<vmem>>, %arg5: memref<8x1xf32, #tpu.memory_space<vmem>>, %arg6: memref<4x8xf32, #tpu.memory_space<vmem>>, %arg7: memref<4x1xf32, #tpu.memory_space<vmem>>, %arg8: memref<4x640xf32, #tpu.memory_space<vmem>>) attributes {dimension_semantics = [#tpu.dimension_semantics<parallel>], iteration_bounds = array<i64: 4>, scalar_prefetch = 0 : i64, scratch_operands = 0 : i64, tpu.core_type = #tpu.core_type<tc>, window_params = [{transform_indices = @transform_0, window_bounds = array<i64: 640, 16>}, {pipeline_mode = #tpu.pipeline_mode<synchronous>, transform_indices = @transform_1, window_bounds = array<i64: 8, 16>}, {pipeline_mode = #tpu.pipeline_mode<synchronous>, transform_indices = @transform_2, window_bounds = array<i64: 8, 1>}, {pipeline_mode = #tpu.pipeline_mode<synchronous>, transform_indices = @transform_3, window_bounds = array<i64: 8, 8>}, {pipeline_mode = #tpu.pipeline_mode<synchronous>, transform_indices = @transform_4, window_bounds = array<i64: 8, 1>}, {pipeline_mode = #tpu.pipeline_mode<synchronous>, transform_indices = @transform_5, window_bounds = array<i64: 4, 8>}, {pipeline_mode = #tpu.pipeline_mode<synchronous>, transform_indices = @transform_6, window_bounds = array<i64: 4, 1>}, {transform_indices = @transform_7, window_bounds = array<i64: 4, 640>}]} {
    %c0 = arith.constant 0 : index
    %c0_0 = arith.constant 0 : index
    %0 = vector.load %arg1[%c0, %c0_0] : memref<640x16xf32, #tpu.memory_space<vmem>>, vector<640x16xf32>
    %c0_1 = arith.constant 0 : index
    %c0_2 = arith.constant 0 : index
    %1 = vector.load %arg2[%c0_1, %c0_2] : memref<8x16xf32, #tpu.memory_space<vmem>>, vector<8x16xf32>
    %cst = arith.constant dense<0.000000e+00> : vector<8x640xf32>
    %2 = tpu.matmul %1, %0, %cst {dimension_numbers = #tpu.dot_dimension_numbers<[1], [1], [0], [0], [0, 0, 1, 0], [], []>} : vector<8x16xf32>, vector<640x16xf32>, vector<8x640xf32> -> vector<8x640xf32>
    %c0_3 = arith.constant 0 : index
    %c0_4 = arith.constant 0 : index
    %3 = vector.load %arg3[%c0_3, %c0_4] : memref<8x1xf32, #tpu.memory_space<vmem>>, vector<8x1xf32>
    %4 = vector.broadcast %3 : vector<8x1xf32> to vector<8x640xf32>
    %5 = arith.addf %2, %4 : vector<8x640xf32>
    %cst_5 = arith.constant 0.000000e+00 : f32
    %6 = vector.broadcast %cst_5 : f32 to vector<8x640xf32>
    %7 = arith.maximumf %5, %6 : vector<8x640xf32>
    %c0_6 = arith.constant 0 : index
    %c0_7 = arith.constant 0 : index
    %8 = vector.load %arg4[%c0_6, %c0_7] : memref<8x8xf32, #tpu.memory_space<vmem>>, vector<8x8xf32>
    %cst_8 = arith.constant dense<0.000000e+00> : vector<8x640xf32>
    %9 = tpu.matmul %8, %7, %cst_8 {dimension_numbers = #tpu.dot_dimension_numbers<[1], [0], [0], [1], [0, 0, 1, 1], [], []>} : vector<8x8xf32>, vector<8x640xf32>, vector<8x640xf32> -> vector<8x640xf32>
    %c0_9 = arith.constant 0 : index
    %c0_10 = arith.constant 0 : index
    %10 = vector.load %arg5[%c0_9, %c0_10] : memref<8x1xf32, #tpu.memory_space<vmem>>, vector<8x1xf32>
    %11 = vector.broadcast %10 : vector<8x1xf32> to vector<8x640xf32>
    %12 = arith.addf %9, %11 : vector<8x640xf32>
    %cst_11 = arith.constant 0.000000e+00 : f32
    %13 = vector.broadcast %cst_11 : f32 to vector<8x640xf32>
    %14 = arith.maximumf %12, %13 : vector<8x640xf32>
    %c0_12 = arith.constant 0 : index
    %c0_13 = arith.constant 0 : index
    %15 = vector.load %arg6[%c0_12, %c0_13] : memref<4x8xf32, #tpu.memory_space<vmem>>, vector<4x8xf32>
    %cst_14 = arith.constant dense<0.000000e+00> : vector<4x640xf32>
    %16 = tpu.matmul %15, %14, %cst_14 {dimension_numbers = #tpu.dot_dimension_numbers<[1], [0], [0], [1], [0, 0, 1, 1], [], []>} : vector<4x8xf32>, vector<8x640xf32>, vector<4x640xf32> -> vector<4x640xf32>
    %c0_15 = arith.constant 0 : index
    %c0_16 = arith.constant 0 : index
    %17 = vector.load %arg7[%c0_15, %c0_16] : memref<4x1xf32, #tpu.memory_space<vmem>>, vector<4x1xf32>
    %18 = vector.broadcast %17 : vector<4x1xf32> to vector<4x640xf32>
    %19 = arith.addf %16, %18 : vector<4x640xf32>
    %c0_17 = arith.constant 0 : index
    %c0_18 = arith.constant 0 : index
    %20 = vector.load %arg8[%c0_17, %c0_18] : memref<4x640xf32, #tpu.memory_space<vmem>>, vector<4x640xf32>
    tpu.vector_store %arg8[%c0_17, %c0_18], %19 {strides = array<i32>} : memref<4x640xf32, #tpu.memory_space<vmem>>, vector<4x640xf32>,
    return
  }
  func.func @transform_0(%arg0: i32) -> (i32, i32) {
    %c0_i32 = arith.constant 0 : i32
    %c0_i32_0 = arith.constant 0 : i32
    return %arg0, %c0_i32 : i32, i32
  }
  func.func @transform_1(%arg0: i32) -> (i32, i32) {
    %c0_i32 = arith.constant 0 : i32
    %c0_i32_0 = arith.constant 0 : i32
    %c0_i32_1 = arith.constant 0 : i32
    return %c0_i32, %c0_i32_0 : i32, i32
  }
  func.func @transform_2(%arg0: i32) -> (i32, i32) {
    %c0_i32 = arith.constant 0 : i32
    %c0_i32_0 = arith.constant 0 : i32
    %c0_i32_1 = arith.constant 0 : i32
    return %c0_i32, %c0_i32_0 : i32, i32
  }
  func.func @transform_3(%arg0: i32) -> (i32, i32) {
    %c0_i32 = arith.constant 0 : i32
    %c0_i32_0 = arith.constant 0 : i32
    %c0_i32_1 = arith.constant 0 : i32
    return %c0_i32, %c0_i32_0 : i32, i32
  }
  func.func @transform_4(%arg0: i32) -> (i32, i32) {
    %c0_i32 = arith.constant 0 : i32
    %c0_i32_0 = arith.constant 0 : i32
    %c0_i32_1 = arith.constant 0 : i32
    return %c0_i32, %c0_i32_0 : i32, i32
  }
  func.func @transform_5(%arg0: i32) -> (i32, i32) {
    %c0_i32 = arith.constant 0 : i32
    %c0_i32_0 = arith.constant 0 : i32
    %c0_i32_1 = arith.constant 0 : i32
    return %c0_i32, %c0_i32_0 : i32, i32
  }
  func.func @transform_6(%arg0: i32) -> (i32, i32) {
    %c0_i32 = arith.constant 0 : i32
    %c0_i32_0 = arith.constant 0 : i32
    %c0_i32_1 = arith.constant 0 : i32
    return %c0_i32, %c0_i32_0 : i32, i32
  }
  func.func @transform_7(%arg0: i32) -> (i32, i32) {
    %c0_i32 = arith.constant 0 : i32
    %c0_i32_0 = arith.constant 0 : i32
    return %c0_i32, %arg0 : i32, i32
  }
}

</mosaic_0001>

<llo_original>
// kernel: tpu_custom_call.1
$region0: #{tpu_custom_call.1}
  #allocation0 [shape = 'u32[]', space=smem, size = 0x4, offset = 0x4, fixed_abs, tag = 'smem constant byte address 0x4 - core index']
  #allocation1 [shape = 'u32[144,128]{1,0:T(1,128)}', space=vmem, size = 0x12000, scoped, tag = 'internal scratch']
  %s0 = inlined_call_operand.vmem [shape: f32[2125,16], index: 0, kind: input, shape index: {}]
  %s1 = inlined_call_operand.vmem [shape: f32[8,16], index: 1, kind: input, shape index: {}]
  %s2 = inlined_call_operand.vmem [shape: f32[8,1], index: 2, kind: input, shape index: {}]
  %s3 = inlined_call_operand.vmem [shape: f32[8,8], index: 3, kind: input, shape index: {}]
  %s4 = inlined_call_operand.vmem [shape: f32[8,1], index: 4, kind: input, shape index: {}]
  %s5 = inlined_call_operand.vmem [shape: f32[4,8], index: 5, kind: input, shape index: {}]
  %s6 = inlined_call_operand.vmem [shape: f32[4,1], index: 6, kind: input, shape index: {}]
  %s7 = inlined_call_operand.hbm [shape: f32[4,2125], index: 7, kind: output, shape index: {}]
  %s8 = sld [smem:[#allocation0]]
  $region61: #{tpu_custom_call.1} parent=0
    _
  %s10 = ssub.s32 1, %s8
  %s11 = scalar_select 0, %s10, %s8
  $region1: #{tpu_custom_call.1} parent=0
    #allocation2 [shape = 'u8[20480]{0}', space=vmem, size = 0x5000, scoped, tag = 'output window, operand 0']
    #allocation3 [shape = 's32[2]{0}', space=sflag, size = 0x8, scoped, tag = 'scoped memory for tpu_custom_call.1']
    %12 = vsyncpa [#allocation3], 0
    %s13 = scalar_lea.sflag [#allocation3], 1
    %14 = vsyncpa %s13, 0
    loop: start=0, step=1, limit=6
    $region2: #{tpu_custom_call.1} parent=1 // loop_pre_header
      _
    $region3: #{tpu_custom_call.1} parent=1 // loop_header
      %s16 = sphi 0, %s20
      %p17 = scmp.ge.s32.totalorder %s16, 6
      %s26 = sphi 0, %s28
      %s29 = sphi 0, %s26
      %s30 = sphi 0, %s29
      %s46 = sphi 0, %s30
      %s50 = sphi 0, %s50
      %s52 = sphi 0, %s50
      %s53 = sphi 0, %s52
      %s67 = sphi 0, %s53
      %s71 = sphi 0, %s71
      %s73 = sphi 0, %s71
      %s74 = sphi 0, %s73
      %s88 = sphi 0, %s74
      %s92 = sphi 0, %s92
      %s94 = sphi 0, %s92
      %s95 = sphi 0, %s94
      %s109 = sphi 0, %s95
      %s113 = sphi 0, %s113
      %s115 = sphi 0, %s113
      %s116 = sphi 0, %s115
      %s130 = sphi 0, %s116
      %s134 = sphi 0, %s134
      %s136 = sphi 0, %s134
      %s137 = sphi 0, %s136
      %s151 = sphi 0, %s137
      %s155 = sphi 0, %s155
      %s157 = sphi 0, %s155
      %s158 = sphi 0, %s157
      %s172 = sphi 0, %s158
      %s178 = sphi 0, %s180
      %s181 = sphi 0, %s178
      %s182 = sphi 0, %s181
      %s198 = sphi 0, %s182
    $region4: #{tpu_custom_call.1} parent=1 // loop_header_branch
      %19 = sbr.rel (%p17) target = $region8
    $region5: #{tpu_custom_call.1} parent=1 // loop_body
      %s21 = ssub.s32 %s16, 1
      %s22 = ssub.s32 %s16, 2
      %s23 = sadd.s32 %s16, 1
      %s24 = ssub.s32 %s16, %s23
      %p25 = scmp.eq.s32.totalorder %s24, 0
      %s27 = sadd.s32 %s26, 1
      %s28 = scalar_select %p25, %s26, %s27
      %p31 = pneg %p25
      %p32 = scmp.eq.s32.totalorder %s16, 3
      %p33 = por %p31, %p32
      %p34 = scmp.ne.s32.totalorder %s26, %s29
      %p35 = scmp.eq.s32.totalorder %s16, 0
      %p36 = por %p34, %p35
      %p37 = scmp.ne.s32.totalorder %s26, %s29
      %p38 = scmp.eq.s32.totalorder %s21, 3
      %p39 = por %p37, %p38
      %p40 = scmp.ne.s32.totalorder %s29, %s30
      %p41 = scmp.eq.s32.totalorder %s21, 0
      %p42 = por %p40, %p41
      %p43 = scmp.ne.s32.totalorder %s29, %s30
      %p44 = scmp.eq.s32.totalorder %s22, 3
      %p45 = por %p43, %p44
      %p47 = scmp.ne.s32.totalorder %s30, %s46
      %p48 = scmp.eq.s32.totalorder %s22, 0
      %p49 = por %p47, %p48
      %s51 = sadd.s32 %s50, 1
      %p54 = scmp.eq.s32.totalorder %s16, 3
      %p55 = scmp.ne.s32.totalorder %s50, %s52
      %p56 = scmp.eq.s32.totalorder %s16, 0
      %p57 = por %p55, %p56
      %p58 = scmp.ne.s32.totalorder %s50, %s52
      %p59 = scmp.eq.s32.totalorder %s21, 3
      %p60 = por %p58, %p59
      %p61 = scmp.ne.s32.totalorder %s52, %s53
      %p62 = scmp.eq.s32.totalorder %s21, 0
      %p63 = por %p61, %p62
      %p64 = scmp.ne.s32.totalorder %s52, %s53
      %p65 = scmp.eq.s32.totalorder %s22, 3
      %p66 = por %p64, %p65
      %p68 = scmp.ne.s32.totalorder %s53, %s67
      %p69 = scmp.eq.s32.totalorder %s22, 0
      %p70 = por %p68, %p69
      %s72 = sadd.s32 %s71, 1
      %p75 = scmp.eq.s32.totalorder %s16, 3
      %p76 = scmp.ne.s32.totalorder %s71, %s73
      %p77 = scmp.eq.s32.totalorder %s16, 0
      %p78 = por %p76, %p77
      %p79 = scmp.ne.s32.totalorder %s71, %s73
      %p80 = scmp.eq.s32.totalorder %s21, 3
      %p81 = por %p79, %p80
      %p82 = scmp.ne.s32.totalorder %s73, %s74
      %p83 = scmp.eq.s32.totalorder %s21, 0
      %p84 = por %p82, %p83
      %p85 = scmp.ne.s32.totalorder %s73, %s74
      %p86 = scmp.eq.s32.totalorder %s22, 3
      %p87 = por %p85, %p86
      %p89 = scmp.ne.s32.totalorder %s74, %s88
      %p90 = scmp.eq.s32.totalorder %s22, 0
      %p91 = por %p89, %p90
      %s93 = sadd.s32 %s92, 1
      %p96 = scmp.eq.s32.totalorder %s16, 3
      %p97 = scmp.ne.s32.totalorder %s92, %s94
      %p98 = scmp.eq.s32.totalorder %s16, 0
      %p99 = por %p97, %p98
      %p100 = scmp.ne.s32.totalorder %s92, %s94
      %p101 = scmp.eq.s32.totalorder %s21, 3
      %p102 = por %p100, %p101
      %p103 = scmp.ne.s32.totalorder %s94, %s95
      %p104 = scmp.eq.s32.totalorder %s21, 0
      %p105 = por %p103, %p104
      %p106 = scmp.ne.s32.totalorder %s94, %s95
      %p107 = scmp.eq.s32.totalorder %s22, 3
      %p108 = por %p106, %p107
      %p110 = scmp.ne.s32.totalorder %s95, %s109
      %p111 = scmp.eq.s32.totalorder %s22, 0
      %p112 = por %p110, %p111
      %s114 = sadd.s32 %s113, 1
      %p117 = scmp.eq.s32.totalorder %s16, 3
      %p118 = scmp.ne.s32.totalorder %s113, %s115
      %p119 = scmp.eq.s32.totalorder %s16, 0
      %p120 = por %p118, %p119
      %p121 = scmp.ne.s32.totalorder %s113, %s115
      %p122 = scmp.eq.s32.totalorder %s21, 3
      %p123 = por %p121, %p122
      %p124 = scmp.ne.s32.totalorder %s115, %s116
      %p125 = scmp.eq.s32.totalorder %s21, 0
      %p126 = por %p124, %p125
      %p127 = scmp.ne.s32.totalorder %s115, %s116
      %p128 = scmp.eq.s32.totalorder %s22, 3
      %p129 = por %p127, %p128
      %p131 = scmp.ne.s32.totalorder %s116, %s130
      %p132 = scmp.eq.s32.totalorder %s22, 0
      %p133 = por %p131, %p132
      %s135 = sadd.s32 %s134, 1
      %p138 = scmp.eq.s32.totalorder %s16, 3
      %p139 = scmp.ne.s32.totalorder %s134, %s136
      %p140 = scmp.eq.s32.totalorder %s16, 0
      %p141 = por %p139, %p140
      %p142 = scmp.ne.s32.totalorder %s134, %s136
      %p143 = scmp.eq.s32.totalorder %s21, 3
      %p144 = por %p142, %p143
      %p145 = scmp.ne.s32.totalorder %s136, %s137
      %p146 = scmp.eq.s32.totalorder %s21, 0
      %p147 = por %p145, %p146
      %p148 = scmp.ne.s32.totalorder %s136, %s137
      %p149 = scmp.eq.s32.totalorder %s22, 3
      %p150 = por %p148, %p149
      %p152 = scmp.ne.s32.totalorder %s137, %s151
      %p153 = scmp.eq.s32.totalorder %s22, 0
      %p154 = por %p152, %p153
      %s156 = sadd.s32 %s155, 1
      %p159 = scmp.eq.s32.totalorder %s16, 3
      %p160 = scmp.ne.s32.totalorder %s155, %s157
      %p161 = scmp.eq.s32.totalorder %s16, 0
      %p162 = por %p160, %p161
      %p163 = scmp.ne.s32.totalorder %s155, %s157
      %p164 = scmp.eq.s32.totalorder %s21, 3
      %p165 = por %p163, %p164
      %p166 = scmp.ne.s32.totalorder %s157, %s158
      %p167 = scmp.eq.s32.totalorder %s21, 0
      %p168 = por %p166, %p167
      %p169 = scmp.ne.s32.totalorder %s157, %s158
      %p170 = scmp.eq.s32.totalorder %s22, 3
      %p171 = por %p169, %p170
      %p173 = scmp.ne.s32.totalorder %s158, %s172
      %p174 = scmp.eq.s32.totalorder %s22, 0
      %p175 = por %p173, %p174
      %s176 = ssub.s32 %s16, %s23
      %p177 = scmp.eq.s32.totalorder %s176, 0
      %s179 = sadd.s32 %s178, 1
      %s180 = scalar_select %p177, %s178, %s179
      %p183 = pneg %p177
      %p184 = scmp.eq.s32.totalorder %s16, 3
      %p185 = por %p183, %p184
      %p186 = scmp.ne.s32.totalorder %s178, %s181
      %p187 = scmp.eq.s32.totalorder %s16, 0
      %p188 = por %p186, %p187
      %p189 = scmp.ne.s32.totalorder %s178, %s181
      %p190 = scmp.eq.s32.totalorder %s21, 3
      %p191 = por %p189, %p190
      %p192 = scmp.ne.s32.totalorder %s181, %s182
      %p193 = scmp.eq.s32.totalorder %s21, 0
      %p194 = por %p192, %p193
      %p195 = scmp.ne.s32.totalorder %s181, %s182
      %p196 = scmp.eq.s32.totalorder %s22, 3
      %p197 = por %p195, %p196
      %p199 = scmp.ne.s32.totalorder %s182, %s198
      %p200 = scmp.eq.s32.totalorder %s22, 0
      %p201 = por %p199, %p200
      %p202 = scmp.le.s32.totalorder 1, %s16
      %p203 = scmp.lt.s32.totalorder %s16, 5
      %p204 = pnand %p202, %p203
      %p205 = pneg %p204
      // Predicated region
      $region9: #{tpu_custom_call.1} parent=5 // pred_check
        _
      $region10: #{tpu_custom_call.1} parent=5 // pred_check_branch
        %207 = sbr.rel (%p204) target = $region12
      $region11: #{tpu_custom_call.1} parent=5 // pred_region
        %s208 = ssub.s32 %s16, 1
        // Predicated region
        $region13: #{tpu_custom_call.1} parent=11 // pred_check
          %p209 = pneg %p63
        $region14: #{tpu_custom_call.1} parent=11 // pred_check_branch
          %211 = sbr.rel (%p209) target = $region16
        $region15: #{tpu_custom_call.1} parent=11 // pred_region
          _
        $region16: #{tpu_custom_call.1} parent=11 // pred_fallthru
          _
        // Predicated region
        $region17: #{tpu_custom_call.1} parent=11 // pred_check
          %p212 = pneg %p84
        $region18: #{tpu_custom_call.1} parent=11 // pred_check_branch
          %214 = sbr.rel (%p212) target = $region20
        $region19: #{tpu_custom_call.1} parent=11 // pred_region
          _
        $region20: #{tpu_custom_call.1} parent=11 // pred_fallthru
          _
        // Predicated region
        $region21: #{tpu_custom_call.1} parent=11 // pred_check
          %p215 = pneg %p105
        $region22: #{tpu_custom_call.1} parent=11 // pred_check_branch
          %217 = sbr.rel (%p215) target = $region24
        $region23: #{tpu_custom_call.1} parent=11 // pred_region
          _
        $region24: #{tpu_custom_call.1} parent=11 // pred_fallthru
          _
        // Predicated region
        $region25: #{tpu_custom_call.1} parent=11 // pred_check
          %p218 = pneg %p126
        $region26: #{tpu_custom_call.1} parent=11 // pred_check_branch
          %220 = sbr.rel (%p218) target = $region28
        $region27: #{tpu_custom_call.1} parent=11 // pred_region
          _
        $region28: #{tpu_custom_call.1} parent=11 // pred_fallthru
          _
        // Predicated region
        $region29: #{tpu_custom_call.1} parent=11 // pred_check
          %p221 = pneg %p147
        $region30: #{tpu_custom_call.1} parent=11 // pred_check_branch
          %223 = sbr.rel (%p221) target = $region32
        $region31: #{tpu_custom_call.1} parent=11 // pred_region
          _
        $region32: #{tpu_custom_call.1} parent=11 // pred_fallthru
          _
        // Predicated region
        $region33: #{tpu_custom_call.1} parent=11 // pred_check
          %p224 = pneg %p168
        $region34: #{tpu_custom_call.1} parent=11 // pred_check_branch
          %226 = sbr.rel (%p224) target = $region36
        $region35: #{tpu_custom_call.1} parent=11 // pred_region
          _
        $region36: #{tpu_custom_call.1} parent=11 // pred_fallthru
          _
      $region12: #{tpu_custom_call.1} parent=5 // pred_fallthru
        _
      %p227 = scmp.lt.s32.totalorder %s16, 4
      // Predicated region
      $region37: #{tpu_custom_call.1} parent=5 // pred_check
        %p228 = pneg %p227
      $region38: #{tpu_custom_call.1} parent=5 // pred_check_branch
        %230 = sbr.rel (%p228) target = $region40
      $region39: #{tpu_custom_call.1} parent=5 // pred_region
        // Predicated region
        $region41: #{tpu_custom_call.1} parent=39 // pred_check
          %p231 = pneg %p36
        $region42: #{tpu_custom_call.1} parent=39 // pred_check_branch
          %233 = sbr.rel (%p231) target = $region44
        $region43: #{tpu_custom_call.1} parent=39 // pred_region
          %s234 = smul.u32 80, %s16
          %s235 = ssub.s32 266, %s234
          %p236 = scmp.lt.s32.totalorder %s235, 80
          %s237 = scalar_select %p236, %s235, 80
          %s238 = smul.u32 128, %s237
          %p239 = scmp.lt.s32.totalorder %s234, 265
          %s240 = scalar_select %p239, %s234, 265
          %s241 = smul.addr %s240, 8
          %s242 = scalar_lea.vmem %s0, %s241
          %s243 = smul.u32 80, %s16
          %s244 = ssub.s32 266, %s243
          %p245 = scmp.lt.s32.totalorder %s244, 80
          %s246 = scalar_select %p245, %s244, 80
          %s247 = smul.u32 128, %s246
        $region44: #{tpu_custom_call.1} parent=39 // pred_fallthru
          _
      $region40: #{tpu_custom_call.1} parent=5 // pred_fallthru
        _
      %p248 = scmp.le.s32.totalorder 1, %s16
      %p249 = scmp.lt.s32.totalorder %s16, 5
      %p250 = pnand %p248, %p249
      %p251 = pneg %p250
      // Predicated region
      $region45: #{tpu_custom_call.1} parent=5 // pred_check
        _
      $region46: #{tpu_custom_call.1} parent=5 // pred_check_branch
        %253 = sbr.rel (%p250) target = $region48
      $region47: #{tpu_custom_call.1} parent=5 // pred_region
        %s254 = ssub.s32 %s16, 1
        %s255 = smul.u32 80, %s21
        %s256 = ssub.s32 266, %s255
        %p257 = scmp.lt.s32.totalorder %s256, 80
        %s258 = scalar_select %p257, %s256, 80
        %s259 = smul.u32 128, %s258
        %p260 = scmp.lt.s32.totalorder %s255, 265
        %s261 = scalar_select %p260, %s255, 265
        %s262 = smul.addr %s261, 8
        %s263 = scalar_lea.vmem %s0, %s262
        %p264 = pneg %p42
        %p265 = pneg %p39
        %p266 = pneg %p63
        %p267 = pneg %p60
        %p268 = pneg %p84
        %p269 = pneg %p81
        %p270 = pneg %p105
        %p271 = pneg %p102
        %p272 = pneg %p126
        %p273 = pneg %p123
        %p274 = pneg %p147
        %p275 = pneg %p144
        %p276 = pneg %p168
        %p277 = pneg %p165
        %p278 = pneg %p194
        %p279 = pneg %p191
        %s280 = sand.u32 %s181, 1
        %s281 = scalar_lea.sflag [#allocation3], %s280
        %s282 = sand.u32 %s181, 1
        %s283 = smul.addr %s282, 20
        %s284 = scalar_lea.vmem [#allocation2], %s283
        %s285 = smul.u32 80, %s21
        %s286 = ssub.s32 266, %s285
        %p287 = scmp.lt.s32.totalorder %s286, 80
        %s288 = scalar_select %p287, %s286, 80
        %s289 = smul.u32 128, %s288
        %p290 = scmp.lt.s32.totalorder %s285, 265
        %s291 = scalar_select %p290, %s285, 265
        %s292 = smul.addr %s291, 8
        %s293 = scalar_lea.vmem %s0, %s292
        %s294 = smul.u32 80, %s21
        %s295 = ssub.s32 266, %s294
        %p296 = scmp.lt.s32.totalorder %s295, 80
        %s297 = scalar_select %p296, %s295, 80
        %s298 = smul.u32 128, %s297
        %s299 = smul.u32 5, %s21
        %s300 = ssub.s32 17, %s299
        %p301 = scmp.lt.s32.totalorder %s300, 5
        %s302 = scalar_select %p301, %s300, 5
        %s303 = smul.u32 64, %s302
        %v304 = vld [vmem:[%s293] sm:$0xff]
        %v305 = vld [vmem:[%s293 + $0x8] sm:$0xff]
        %v306 = vld [vmem:[%s293 + $0x10] sm:$0xff]
        %v307 = vld [vmem:[%s293 + $0x18] sm:$0xff]
        %v308 = vld [vmem:[%s293 + $0x20] sm:$0xff]
        %v309 = vld [vmem:[%s293 + $0x28] sm:$0xff]
        %v310 = vld [vmem:[%s293 + $0x30] sm:$0xff]
        %v311 = vld [vmem:[%s293 + $0x38] sm:$0xff]
        %v312 = vld [vmem:[%s293 + $0x40] sm:$0xff]
        %v313 = vld [vmem:[%s293 + $0x48] sm:$0xff]
        %v314 = vld [vmem:[%s293 + $0x50] sm:$0xff]
        %v315 = vld [vmem:[%s293 + $0x58] sm:$0xff]
        %v316 = vld [vmem:[%s293 + $0x60] sm:$0xff]
        %v317 = vld [vmem:[%s293 + $0x68] sm:$0xff]
        %v318 = vld [vmem:[%s293 + $0x70] sm:$0xff]
        %v319 = vld [vmem:[%s293 + $0x78] sm:$0xff]
        %v320 = vld [vmem:[%s293 + $0x80] sm:$0xff]
        %v321 = vld [vmem:[%s293 + $0x88] sm:$0xff]
        %v322 = vld [vmem:[%s293 + $0x90] sm:$0xff]
        %v323 = vld [vmem:[%s293 + $0x98] sm:$0xff]
        %v324 = vld [vmem:[%s293 + $0xa0] sm:$0xff]
        %v325 = vld [vmem:[%s293 + $0xa8] sm:$0xff]
        %v326 = vld [vmem:[%s293 + $0xb0] sm:$0xff]
        %v327 = vld [vmem:[%s293 + $0xb8] sm:$0xff]
        %v328 = vld [vmem:[%s293 + $0xc0] sm:$0xff]
        %v329 = vld [vmem:[%s293 + $0xc8] sm:$0xff]
        %v330 = vld [vmem:[%s293 + $0xd0] sm:$0xff]
        %v331 = vld [vmem:[%s293 + $0xd8] sm:$0xff]
        %v332 = vld [vmem:[%s293 + $0xe0] sm:$0xff]
        %v333 = vld [vmem:[%s293 + $0xe8] sm:$0xff]
        %v334 = vld [vmem:[%s293 + $0xf0] sm:$0xff]
        %v335 = vld [vmem:[%s293 + $0xf8] sm:$0xff]
        %v336 = vld [vmem:[%s293 + $0x100] sm:$0xff]
        %v337 = vld [vmem:[%s293 + $0x108] sm:$0xff]
        %v338 = vld [vmem:[%s293 + $0x110] sm:$0xff]
        %v339 = vld [vmem:[%s293 + $0x118] sm:$0xff]
        %v340 = vld [vmem:[%s293 + $0x120] sm:$0xff]
        %v341 = vld [vmem:[%s293 + $0x128] sm:$0xff]
        %v342 = vld [vmem:[%s293 + $0x130] sm:$0xff]
        %v343 = vld [vmem:[%s293 + $0x138] sm:$0xff]
        %v344 = vld [vmem:[%s293 + $0x140] sm:$0xff]
        %v345 = vld [vmem:[%s293 + $0x148] sm:$0xff]
        %v346 = vld [vmem:[%s293 + $0x150] sm:$0xff]
        %v347 = vld [vmem:[%s293 + $0x158] sm:$0xff]
        %v348 = vld [vmem:[%s293 + $0x160] sm:$0xff]
        %v349 = vld [vmem:[%s293 + $0x168] sm:$0xff]
        %v350 = vld [vmem:[%s293 + $0x170] sm:$0xff]
        %v351 = vld [vmem:[%s293 + $0x178] sm:$0xff]
        %v352 = vld [vmem:[%s293 + $0x180] sm:$0xff]
        %v353 = vld [vmem:[%s293 + $0x188] sm:$0xff]
        %v354 = vld [vmem:[%s293 + $0x190] sm:$0xff]
        %v355 = vld [vmem:[%s293 + $0x198] sm:$0xff]
        %v356 = vld [vmem:[%s293 + $0x1a0] sm:$0xff]
        %v357 = vld [vmem:[%s293 + $0x1a8] sm:$0xff]
        %v358 = vld [vmem:[%s293 + $0x1b0] sm:$0xff]
        %v359 = vld [vmem:[%s293 + $0x1b8] sm:$0xff]
        %v360 = vld [vmem:[%s293 + $0x1c0] sm:$0xff]
        %v361 = vld [vmem:[%s293 + $0x1c8] sm:$0xff]
        %v362 = vld [vmem:[%s293 + $0x1d0] sm:$0xff]
        %v363 = vld [vmem:[%s293 + $0x1d8] sm:$0xff]
        %v364 = vld [vmem:[%s293 + $0x1e0] sm:$0xff]
        %v365 = vld [vmem:[%s293 + $0x1e8] sm:$0xff]
        %v366 = vld [vmem:[%s293 + $0x1f0] sm:$0xff]
        %v367 = vld [vmem:[%s293 + $0x1f8] sm:$0xff]
        %v368 = vld [vmem:[%s293 + $0x200] sm:$0xff]
        %v369 = vld [vmem:[%s293 + $0x208] sm:$0xff]
        %v370 = vld [vmem:[%s293 + $0x210] sm:$0xff]
        %v371 = vld [vmem:[%s293 + $0x218] sm:$0xff]
        %v372 = vld [vmem:[%s293 + $0x220] sm:$0xff]
        %v373 = vld [vmem:[%s293 + $0x228] sm:$0xff]
        %v374 = vld [vmem:[%s293 + $0x230] sm:$0xff]
        %v375 = vld [vmem:[%s293 + $0x238] sm:$0xff]
        %v376 = vld [vmem:[%s293 + $0x240] sm:$0xff]
        %v377 = vld [vmem:[%s293 + $0x248] sm:$0xff]
        %v378 = vld [vmem:[%s293 + $0x250] sm:$0xff]
        %v379 = vld [vmem:[%s293 + $0x258] sm:$0xff]
        %v380 = vld [vmem:[%s293 + $0x260] sm:$0xff]
        %v381 = vld [vmem:[%s293 + $0x268] sm:$0xff]
        %v382 = vld [vmem:[%s293 + $0x270] sm:$0xff]
        %v383 = vld [vmem:[%s293 + $0x278] sm:$0xff]
        %v384 = vld [vmem:[%s1] sm:$0xff]
        %v385 = vld [vmem:[%s2] sm:$0xff]
        %387 = vset.pattern.permute.xlu0 0
        %388 = vperm.xlu0 %387, %v385
        %v389 = vpop.permute.xlu0 %388
        %vm391 = vcmask 130048
        %v393 = vsel %vm391, %v384, 0
        %v396 = vsel %vm391, %v304, 0
        %v399 = vsel %vm391, %v305, 0
        %v402 = vsel %vm391, %v306, 0
        %v405 = vsel %vm391, %v307, 0
        %v408 = vsel %vm391, %v308, 0
        %v411 = vsel %vm391, %v309, 0
        %v414 = vsel %vm391, %v310, 0
        %v417 = vsel %vm391, %v311, 0
        %v420 = vsel %vm391, %v312, 0
        %v423 = vsel %vm391, %v313, 0
        %v426 = vsel %vm391, %v314, 0
        %v429 = vsel %vm391, %v315, 0
        %v432 = vsel %vm391, %v316, 0
        %v435 = vsel %vm391, %v317, 0
        %v438 = vsel %vm391, %v318, 0
        %v441 = vsel %vm391, %v319, 0
        %v444 = vsel %vm391, %v320, 0
        %v447 = vsel %vm391, %v321, 0
        %v450 = vsel %vm391, %v322, 0
        %v453 = vsel %vm391, %v323, 0
        %v456 = vsel %vm391, %v324, 0
        %v459 = vsel %vm391, %v325, 0
        %v462 = vsel %vm391, %v326, 0
        %v465 = vsel %vm391, %v327, 0
        %v468 = vsel %vm391, %v328, 0
        %v471 = vsel %vm391, %v329, 0
        %v474 = vsel %vm391, %v330, 0
        %v477 = vsel %vm391, %v331, 0
        %v480 = vsel %vm391, %v332, 0
        %v483 = vsel %vm391, %v333, 0
        %v486 = vsel %vm391, %v334, 0
        %v489 = vsel %vm391, %v335, 0
        %v492 = vsel %vm391, %v336, 0
        %v495 = vsel %vm391, %v337, 0
        %v498 = vsel %vm391, %v338, 0
        %v501 = vsel %vm391, %v339, 0
        %v504 = vsel %vm391, %v340, 0
        %v507 = vsel %vm391, %v341, 0
        %v510 = vsel %vm391, %v342, 0
        %v513 = vsel %vm391, %v343, 0
        %v516 = vsel %vm391, %v344, 0
        %v519 = vsel %vm391, %v345, 0
        %v522 = vsel %vm391, %v346, 0
        %v525 = vsel %vm391, %v347, 0
        %v528 = vsel %vm391, %v348, 0
        %v531 = vsel %vm391, %v349, 0
        %v534 = vsel %vm391, %v350, 0
        %v537 = vsel %vm391, %v351, 0
        %v540 = vsel %vm391, %v352, 0
        %v543 = vsel %vm391, %v353, 0
        %v546 = vsel %vm391, %v354, 0
        %v549 = vsel %vm391, %v355, 0
        %v552 = vsel %vm391, %v356, 0
        %v555 = vsel %vm391, %v357, 0
        %v558 = vsel %vm391, %v358, 0
        %v561 = vsel %vm391, %v359, 0
        %v564 = vsel %vm391, %v360, 0
        %v567 = vsel %vm391, %v361, 0
        %v570 = vsel %vm391, %v362, 0
        %v573 = vsel %vm391, %v363, 0
        %v576 = vsel %vm391, %v364, 0
        %v579 = vsel %vm391, %v365, 0
        %v582 = vsel %vm391, %v366, 0
        %v585 = vsel %vm391, %v367, 0
        %v588 = vsel %vm391, %v368, 0
        %v591 = vsel %vm391, %v369, 0
        %v594 = vsel %vm391, %v370, 0
        %v597 = vsel %vm391, %v371, 0
        %v600 = vsel %vm391, %v372, 0
        %v603 = vsel %vm391, %v373, 0
        %v606 = vsel %vm391, %v374, 0
        %v609 = vsel %vm391, %v375, 0
        %v612 = vsel %vm391, %v376, 0
        %v615 = vsel %vm391, %v377, 0
        %v618 = vsel %vm391, %v378, 0
        %v621 = vsel %vm391, %v379, 0
        %v624 = vsel %vm391, %v380, 0
        %v627 = vsel %vm391, %v381, 0
        %v630 = vsel %vm391, %v382, 0
        %v633 = vsel %vm391, %v383, 0
        %635 = vmatprep.subr.mxu0 0.0
        %636 = vmatpush1.xpose.msra.mxu0 %v396
        %637 = vmatprep.subr.mxu0 0.0
        %638 = vmatpush1.xpose.msra.mxu0 %v399
        %639 = vmatprep.subr.mxu0 0.0
        %640 = vmatpush1.xpose.msra.mxu0 %v402
        %641 = vmatprep.subr.mxu0 0.0
        %642 = vmatpush1.xpose.msra.mxu0 %v405
        %643 = vmatprep.subr.mxu0 0.0
        %644 = vmatpush1.xpose.msra.mxu0 %v408
        %645 = vmatprep.subr.mxu0 0.0
        %646 = vmatpush1.xpose.msra.mxu0 %v411
        %647 = vmatprep.subr.mxu0 0.0
        %648 = vmatpush1.xpose.msra.mxu0 %v414
        %649 = vmatprep.subr.mxu0 0.0
        %650 = vmatpush1.xpose.msra.mxu0 %v417
        %651 = vmatprep.subr.mxu0 0.0
        %652 = vmatpush1.xpose.msra.mxu0 %v420
        %653 = vmatprep.subr.mxu0 0.0
        %654 = vmatpush1.xpose.msra.mxu0 %v423
        %655 = vmatprep.subr.mxu0 0.0
        %656 = vmatpush1.xpose.msra.mxu0 %v426
        %657 = vmatprep.subr.mxu0 0.0
        %658 = vmatpush1.xpose.msra.mxu0 %v429
        %659 = vmatprep.subr.mxu0 0.0
        %660 = vmatpush1.xpose.msra.mxu0 %v432
        %661 = vmatprep.subr.mxu0 0.0
        %662 = vmatpush1.xpose.msra.mxu0 %v435
        %663 = vmatprep.subr.mxu0 0.0
        %664 = vmatpush1.xpose.msra.mxu0 %v438
        %665 = vmatprep.subr.mxu0 0.0
        %666 = vmatpush1.xpose.msra.mxu0 %v441
        %667 = vmatprep.subr.mxu0 0.0
        %668 = vmatpush1.xpose.msra.mxu0 %v444
        %669 = vmatprep.subr.mxu0 0.0
        %670 = vmatpush1.xpose.msra.mxu0 %v447
        %671 = vmatprep.subr.mxu0 0.0
        %672 = vmatpush1.xpose.msra.mxu0 %v450
        %673 = vmatprep.subr.mxu0 0.0
        %674 = vmatpush1.xpose.msra.mxu0 %v453
        %675 = vmatprep.subr.mxu0 0.0
        %676 = vmatpush1.xpose.msra.mxu0 %v456
        %677 = vmatprep.subr.mxu0 0.0
        %678 = vmatpush1.xpose.msra.mxu0 %v459
        %679 = vmatprep.subr.mxu0 0.0
        %680 = vmatpush1.xpose.msra.mxu0 %v462
        %681 = vmatprep.subr.mxu0 0.0
        %682 = vmatpush1.xpose.msra.mxu0 %v465
        %683 = vmatprep.subr.mxu0 0.0
        %684 = vmatpush1.xpose.msra.mxu0 %v468
        %685 = vmatprep.subr.mxu0 0.0
        %686 = vmatpush1.xpose.msra.mxu0 %v471
        %687 = vmatprep.subr.mxu0 0.0
        %688 = vmatpush1.xpose.msra.mxu0 %v474
        %689 = vmatprep.subr.mxu0 0.0
        %690 = vmatpush1.xpose.msra.mxu0 %v477
        %691 = vmatprep.subr.mxu0 0.0
        %692 = vmatpush1.xpose.msra.mxu0 %v480
        %693 = vmatprep.subr.mxu0 0.0
        %694 = vmatpush1.xpose.msra.mxu0 %v483
        %695 = vmatprep.subr.mxu0 0.0
        %696 = vmatpush1.xpose.msra.mxu0 %v486
        %697 = vmatprep.subr.mxu0 0.0
        %698 = vmatpush1.xpose.msra.mxu0 %v489
        %699 = vmatprep.mubr.f32.mxu0 0.0
        %700 = vmatmul.mubr.f32.gmra.mrb[0].mxu0 %v393
        %v701 = vpop.f32.mrb[0].mxu0
        %v702 = vadd.f32 %v389, %v701
        %v703 = vpop.f32.mrb[0].mxu0
        %v704 = vadd.f32 %v389, %v703
        %705 = vdwg.mxu0
        %706 = vmatprep.subr.mxu0 0.0
        %707 = vmatpush1.xpose.msra.mxu0 %v492
        %708 = vmatprep.subr.mxu0 0.0
        %709 = vmatpush1.xpose.msra.mxu0 %v495
        %710 = vmatprep.subr.mxu0 0.0
        %711 = vmatpush1.xpose.msra.mxu0 %v498
        %712 = vmatprep.subr.mxu0 0.0
        %713 = vmatpush1.xpose.msra.mxu0 %v501
        %714 = vmatprep.subr.mxu0 0.0
        %715 = vmatpush1.xpose.msra.mxu0 %v504
        %716 = vmatprep.subr.mxu0 0.0
        %717 = vmatpush1.xpose.msra.mxu0 %v507
        %718 = vmatprep.subr.mxu0 0.0
        %719 = vmatpush1.xpose.msra.mxu0 %v510
        %720 = vmatprep.subr.mxu0 0.0
        %721 = vmatpush1.xpose.msra.mxu0 %v513
        %722 = vmatprep.subr.mxu0 0.0
        %723 = vmatpush1.xpose.msra.mxu0 %v516
        %724 = vmatprep.subr.mxu0 0.0
        %725 = vmatpush1.xpose.msra.mxu0 %v519
        %726 = vmatprep.subr.mxu0 0.0
        %727 = vmatpush1.xpose.msra.mxu0 %v522
        %728 = vmatprep.subr.mxu0 0.0
        %729 = vmatpush1.xpose.msra.mxu0 %v525
        %730 = vmatprep.subr.mxu0 0.0
        %731 = vmatpush1.xpose.msra.mxu0 %v528
        %732 = vmatprep.subr.mxu0 0.0
        %733 = vmatpush1.xpose.msra.mxu0 %v531
        %734 = vmatprep.subr.mxu0 0.0
        %735 = vmatpush1.xpose.msra.mxu0 %v534
        %736 = vmatprep.subr.mxu0 0.0
        %737 = vmatpush1.xpose.msra.mxu0 %v537
        %738 = vmatprep.subr.mxu0 0.0
        %739 = vmatpush1.xpose.msra.mxu0 %v540
        %740 = vmatprep.subr.mxu0 0.0
        %741 = vmatpush1.xpose.msra.mxu0 %v543
        %742 = vmatprep.subr.mxu0 0.0
        %743 = vmatpush1.xpose.msra.mxu0 %v546
        %744 = vmatprep.subr.mxu0 0.0
        %745 = vmatpush1.xpose.msra.mxu0 %v549
        %746 = vmatprep.subr.mxu0 0.0
        %747 = vmatpush1.xpose.msra.mxu0 %v552
        %748 = vmatprep.subr.mxu0 0.0
        %749 = vmatpush1.xpose.msra.mxu0 %v555
        %750 = vmatprep.subr.mxu0 0.0
        %751 = vmatpush1.xpose.msra.mxu0 %v558
        %752 = vmatprep.subr.mxu0 0.0
        %753 = vmatpush1.xpose.msra.mxu0 %v561
        %754 = vmatprep.subr.mxu0 0.0
        %755 = vmatpush1.xpose.msra.mxu0 %v564
        %756 = vmatprep.subr.mxu0 0.0
        %757 = vmatpush1.xpose.msra.mxu0 %v567
        %758 = vmatprep.subr.mxu0 0.0
        %759 = vmatpush1.xpose.msra.mxu0 %v570
        %760 = vmatprep.subr.mxu0 0.0
        %761 = vmatpush1.xpose.msra.mxu0 %v573
        %762 = vmatprep.subr.mxu0 0.0
        %763 = vmatpush1.xpose.msra.mxu0 %v576
        %764 = vmatprep.subr.mxu0 0.0
        %765 = vmatpush1.xpose.msra.mxu0 %v579
        %766 = vmatprep.subr.mxu0 0.0
        %767 = vmatpush1.xpose.msra.mxu0 %v582
        %768 = vmatprep.subr.mxu0 0.0
        %769 = vmatpush1.xpose.msra.mxu0 %v585
        %770 = vmatprep.mubr.f32.mxu0 0.0
        %771 = vmatmul.mubr.f32.gmra.mrb[0].mxu0 %v393
        %v772 = vpop.f32.mrb[0].mxu0
        %v773 = vadd.f32 %v389, %v772
        %v774 = vpop.f32.mrb[0].mxu0
        %v775 = vadd.f32 %v389, %v774
        %776 = vdwg.mxu0
        %777 = vmatprep.subr.mxu0 0.0
        %778 = vmatpush1.xpose.msra.mxu0 %v588
        %779 = vmatprep.subr.mxu0 0.0
        %780 = vmatpush1.xpose.msra.mxu0 %v591
        %781 = vmatprep.subr.mxu0 0.0
        %782 = vmatpush1.xpose.msra.mxu0 %v594
        %783 = vmatprep.subr.mxu0 0.0
        %784 = vmatpush1.xpose.msra.mxu0 %v597
        %785 = vmatprep.subr.mxu0 0.0
        %786 = vmatpush1.xpose.msra.mxu0 %v600
        %787 = vmatprep.subr.mxu0 0.0
        %788 = vmatpush1.xpose.msra.mxu0 %v603
        %789 = vmatprep.subr.mxu0 0.0
        %790 = vmatpush1.xpose.msra.mxu0 %v606
        %791 = vmatprep.subr.mxu0 0.0
        %792 = vmatpush1.xpose.msra.mxu0 %v609
        %793 = vmatprep.subr.mxu0 0.0
        %794 = vmatpush1.xpose.msra.mxu0 %v612
        %795 = vmatprep.subr.mxu0 0.0
        %796 = vmatpush1.xpose.msra.mxu0 %v615
        %797 = vmatprep.subr.mxu0 0.0
        %798 = vmatpush1.xpose.msra.mxu0 %v618
        %799 = vmatprep.subr.mxu0 0.0
        %800 = vmatpush1.xpose.msra.mxu0 %v621
        %801 = vmatprep.subr.mxu0 0.0
        %802 = vmatpush1.xpose.msra.mxu0 %v624
        %803 = vmatprep.subr.mxu0 0.0
        %804 = vmatpush1.xpose.msra.mxu0 %v627
        %805 = vmatprep.subr.mxu0 0.0
        %806 = vmatpush1.xpose.msra.mxu0 %v630
        %807 = vmatprep.subr.mxu0 0.0
        %808 = vmatpush1.xpose.msra.mxu0 %v633
        %809 = vmatprep.subr.mxu0 0.0
        %810 = vmatpush1.xpose.msra.mxu0 0.0
        %811 = vmatprep.subr.mxu0 0.0
        %812 = vmatpush1.xpose.msra.mxu0 0.0
        %813 = vmatprep.subr.mxu0 0.0
        %814 = vmatpush1.xpose.msra.mxu0 0.0
        %815 = vmatprep.subr.mxu0 0.0
        %816 = vmatpush1.xpose.msra.mxu0 0.0
        %817 = vmatprep.subr.mxu0 0.0
        %818 = vmatpush1.xpose.msra.mxu0 0.0
        %819 = vmatprep.subr.mxu0 0.0
        %820 = vmatpush1.xpose.msra.mxu0 0.0
        %821 = vmatprep.subr.mxu0 0.0
        %822 = vmatpush1.xpose.msra.mxu0 0.0
        %823 = vmatprep.subr.mxu0 0.0
        %824 = vmatpush1.xpose.msra.mxu0 0.0
        %825 = vmatprep.subr.mxu0 0.0
        %826 = vmatpush1.xpose.msra.mxu0 0.0
        %827 = vmatprep.subr.mxu0 0.0
        %828 = vmatpush1.xpose.msra.mxu0 0.0
        %829 = vmatprep.subr.mxu0 0.0
        %830 = vmatpush1.xpose.msra.mxu0 0.0
        %831 = vmatprep.subr.mxu0 0.0
        %832 = vmatpush1.xpose.msra.mxu0 0.0
        %833 = vmatprep.subr.mxu0 0.0
        %834 = vmatpush1.xpose.msra.mxu0 0.0
        %835 = vmatprep.subr.mxu0 0.0
        %836 = vmatpush1.xpose.msra.mxu0 0.0
        %837 = vmatprep.subr.mxu0 0.0
        %838 = vmatpush1.xpose.msra.mxu0 0.0
        %839 = vmatprep.subr.mxu0 0.0
        %840 = vmatpush1.xpose.msra.mxu0 0.0
        %841 = vmatprep.mubr.f32.mxu0 0.0
        %842 = vmatmul.mubr.f32.gmra.mrb[0].mxu0 %v393
        %v843 = vpop.f32.mrb[0].mxu0
        %v844 = vadd.f32 %v389, %v843
        %v845 = vpop.f32.mrb[0].mxu0
        %846 = vdwg.mxu0
        %v847 = vmax.f32 %v702, 0.0
        %v848 = vmax.f32 %v704, 0.0
        %v849 = vmax.f32 %v773, 0.0
        %v850 = vmax.f32 %v775, 0.0
        %v851 = vmax.f32 %v844, 0.0
        %v852 = vld [vmem:[%s3] sm:$0xff]
        %v853 = vld [vmem:[%s4] sm:$0xff]
        %855 = vset.pattern.permute.xlu0 0
        %856 = vperm.xlu0 %855, %v853
        %v857 = vpop.permute.xlu0 %856
        %vm859 = vcmask 64512
        %v861 = vsel %vm859, %v852, 0
        %863 = vmatprep.subr.mxu0 %v848
        %864 = vmatpush1.msra.mxu0 %v847
        %865 = vmatprep.subr.mxu0 0.0
        %866 = vmatpush1.msra.mxu0 0.0
        %867 = vmatprep.subr.mxu0 0.0
        %868 = vmatpush1.msra.mxu0 0.0
        %869 = vmatprep.subr.mxu0 0.0
        %870 = vmatpush1.msra.mxu0 0.0
        %871 = vmatprep.subr.mxu0 0.0
        %872 = vmatpush1.msra.mxu0 0.0
        %873 = vmatprep.subr.mxu0 0.0
        %874 = vmatpush1.msra.mxu0 0.0
        %875 = vmatprep.subr.mxu0 0.0
        %876 = vmatpush1.msra.mxu0 0.0
        %877 = vmatprep.subr.mxu0 0.0
        %878 = vmatpush1.msra.mxu0 0.0
        %879 = vmatprep.subr.mxu0 0.0
        %880 = vmatpush1.msra.mxu0 0.0
        %881 = vmatprep.subr.mxu0 0.0
        %882 = vmatpush1.msra.mxu0 0.0
        %883 = vmatprep.subr.mxu0 0.0
        %884 = vmatpush1.msra.mxu0 0.0
        %885 = vmatprep.subr.mxu0 0.0
        %886 = vmatpush1.msra.mxu0 0.0
        %887 = vmatprep.subr.mxu0 0.0
        %888 = vmatpush1.msra.mxu0 0.0
        %889 = vmatprep.subr.mxu0 0.0
        %890 = vmatpush1.msra.mxu0 0.0
        %891 = vmatprep.subr.mxu0 0.0
        %892 = vmatpush1.msra.mxu0 0.0
        %893 = vmatprep.subr.mxu0 0.0
        %894 = vmatpush1.msra.mxu0 0.0
        %895 = vmatprep.subr.mxu0 0.0
        %896 = vmatpush1.msra.mxu0 0.0
        %897 = vmatprep.subr.mxu0 0.0
        %898 = vmatpush1.msra.mxu0 0.0
        %899 = vmatprep.subr.mxu0 0.0
        %900 = vmatpush1.msra.mxu0 0.0
        %901 = vmatprep.subr.mxu0 0.0
        %902 = vmatpush1.msra.mxu0 0.0
        %903 = vmatprep.subr.mxu0 0.0
        %904 = vmatpush1.msra.mxu0 0.0
        %905 = vmatprep.subr.mxu0 0.0
        %906 = vmatpush1.msra.mxu0 0.0
        %907 = vmatprep.subr.mxu0 0.0
        %908 = vmatpush1.msra.mxu0 0.0
        %909 = vmatprep.subr.mxu0 0.0
        %910 = vmatpush1.msra.mxu0 0.0
        %911 = vmatprep.subr.mxu0 0.0
        %912 = vmatpush1.msra.mxu0 0.0
        %913 = vmatprep.subr.mxu0 0.0
        %914 = vmatpush1.msra.mxu0 0.0
        %915 = vmatprep.subr.mxu0 0.0
        %916 = vmatpush1.msra.mxu0 0.0
        %917 = vmatprep.subr.mxu0 0.0
        %918 = vmatpush1.msra.mxu0 0.0
        %919 = vmatprep.subr.mxu0 0.0
        %920 = vmatpush1.msra.mxu0 0.0
        %921 = vmatprep.subr.mxu0 0.0
        %922 = vmatpush1.msra.mxu0 0.0
        %923 = vmatprep.subr.mxu0 0.0
        %924 = vmatpush1.msra.mxu0 0.0
        %925 = vmatprep.subr.mxu0 0.0
        %926 = vmatpush1.msra.mxu0 0.0
        %927 = vmatprep.mubr.f32.mxu0 0.0
        %928 = vmatmul.mubr.f32.gmra.mrb[0].mxu0 %v861
        %v929 = vpop.f32.mrb[0].mxu0
        %v930 = vadd.f32 %v857, %v929
        %v931 = vpop.f32.mrb[0].mxu0
        %v932 = vadd.f32 %v857, %v931
        %933 = vdwg.mxu0
        %934 = vmatprep.subr.mxu0 %v850
        %935 = vmatpush1.msra.mxu0 %v849
        %936 = vmatprep.subr.mxu0 0.0
        %937 = vmatpush1.msra.mxu0 0.0
        %938 = vmatprep.subr.mxu0 0.0
        %939 = vmatpush1.msra.mxu0 0.0
        %940 = vmatprep.subr.mxu0 0.0
        %941 = vmatpush1.msra.mxu0 0.0
        %942 = vmatprep.subr.mxu0 0.0
        %943 = vmatpush1.msra.mxu0 0.0
        %944 = vmatprep.subr.mxu0 0.0
        %945 = vmatpush1.msra.mxu0 0.0
        %946 = vmatprep.subr.mxu0 0.0
        %947 = vmatpush1.msra.mxu0 0.0
        %948 = vmatprep.subr.mxu0 0.0
        %949 = vmatpush1.msra.mxu0 0.0
        %950 = vmatprep.subr.mxu0 0.0
        %951 = vmatpush1.msra.mxu0 0.0
        %952 = vmatprep.subr.mxu0 0.0
        %953 = vmatpush1.msra.mxu0 0.0
        %954 = vmatprep.subr.mxu0 0.0
        %955 = vmatpush1.msra.mxu0 0.0
        %956 = vmatprep.subr.mxu0 0.0
        %957 = vmatpush1.msra.mxu0 0.0
        %958 = vmatprep.subr.mxu0 0.0
        %959 = vmatpush1.msra.mxu0 0.0
        %960 = vmatprep.subr.mxu0 0.0
        %961 = vmatpush1.msra.mxu0 0.0
        %962 = vmatprep.subr.mxu0 0.0
        %963 = vmatpush1.msra.mxu0 0.0
        %964 = vmatprep.subr.mxu0 0.0
        %965 = vmatpush1.msra.mxu0 0.0
        %966 = vmatprep.subr.mxu0 0.0
        %967 = vmatpush1.msra.mxu0 0.0
        %968 = vmatprep.subr.mxu0 0.0
        %969 = vmatpush1.msra.mxu0 0.0
        %970 = vmatprep.subr.mxu0 0.0
        %971 = vmatpush1.msra.mxu0 0.0
        %972 = vmatprep.subr.mxu0 0.0
        %973 = vmatpush1.msra.mxu0 0.0
        %974 = vmatprep.subr.mxu0 0.0
        %975 = vmatpush1.msra.mxu0 0.0
        %976 = vmatprep.subr.mxu0 0.0
        %977 = vmatpush1.msra.mxu0 0.0
        %978 = vmatprep.subr.mxu0 0.0
        %979 = vmatpush1.msra.mxu0 0.0
        %980 = vmatprep.subr.mxu0 0.0
        %981 = vmatpush1.msra.mxu0 0.0
        %982 = vmatprep.subr.mxu0 0.0
        %983 = vmatpush1.msra.mxu0 0.0
        %984 = vmatprep.subr.mxu0 0.0
        %985 = vmatpush1.msra.mxu0 0.0
        %986 = vmatprep.subr.mxu0 0.0
        %987 = vmatpush1.msra.mxu0 0.0
        %988 = vmatprep.subr.mxu0 0.0
        %989 = vmatpush1.msra.mxu0 0.0
        %990 = vmatprep.subr.mxu0 0.0
        %991 = vmatpush1.msra.mxu0 0.0
        %992 = vmatprep.subr.mxu0 0.0
        %993 = vmatpush1.msra.mxu0 0.0
        %994 = vmatprep.subr.mxu0 0.0
        %995 = vmatpush1.msra.mxu0 0.0
        %996 = vmatprep.subr.mxu0 0.0
        %997 = vmatpush1.msra.mxu0 0.0
        %998 = vmatprep.mubr.f32.mxu0 0.0
        %999 = vmatmul.mubr.f32.gmra.mrb[0].mxu0 %v861
        %v1000 = vpop.f32.mrb[0].mxu0
        %v1001 = vadd.f32 %v857, %v1000
        %v1002 = vpop.f32.mrb[0].mxu0
        %v1003 = vadd.f32 %v857, %v1002
        %1004 = vdwg.mxu0
        %1005 = vmatprep.subr.mxu0 0.0
        %1006 = vmatpush1.msra.mxu0 %v851
        %1007 = vmatprep.subr.mxu0 0.0
        %1008 = vmatpush1.msra.mxu0 0.0
        %1009 = vmatprep.subr.mxu0 0.0
        %1010 = vmatpush1.msra.mxu0 0.0
        %1011 = vmatprep.subr.mxu0 0.0
        %1012 = vmatpush1.msra.mxu0 0.0
        %1013 = vmatprep.subr.mxu0 0.0
        %1014 = vmatpush1.msra.mxu0 0.0
        %1015 = vmatprep.subr.mxu0 0.0
        %1016 = vmatpush1.msra.mxu0 0.0
        %1017 = vmatprep.subr.mxu0 0.0
        %1018 = vmatpush1.msra.mxu0 0.0
        %1019 = vmatprep.subr.mxu0 0.0
        %1020 = vmatpush1.msra.mxu0 0.0
        %1021 = vmatprep.subr.mxu0 0.0
        %1022 = vmatpush1.msra.mxu0 0.0
        %1023 = vmatprep.subr.mxu0 0.0
        %1024 = vmatpush1.msra.mxu0 0.0
        %1025 = vmatprep.subr.mxu0 0.0
        %1026 = vmatpush1.msra.mxu0 0.0
        %1027 = vmatprep.subr.mxu0 0.0
        %1028 = vmatpush1.msra.mxu0 0.0
        %1029 = vmatprep.subr.mxu0 0.0
        %1030 = vmatpush1.msra.mxu0 0.0
        %1031 = vmatprep.subr.mxu0 0.0
        %1032 = vmatpush1.msra.mxu0 0.0
        %1033 = vmatprep.subr.mxu0 0.0
        %1034 = vmatpush1.msra.mxu0 0.0
        %1035 = vmatprep.subr.mxu0 0.0
        %1036 = vmatpush1.msra.mxu0 0.0
        %1037 = vmatprep.subr.mxu0 0.0
        %1038 = vmatpush1.msra.mxu0 0.0
        %1039 = vmatprep.subr.mxu0 0.0
        %1040 = vmatpush1.msra.mxu0 0.0
        %1041 = vmatprep.subr.mxu0 0.0
        %1042 = vmatpush1.msra.mxu0 0.0
        %1043 = vmatprep.subr.mxu0 0.0
        %1044 = vmatpush1.msra.mxu0 0.0
        %1045 = vmatprep.subr.mxu0 0.0
        %1046 = vmatpush1.msra.mxu0 0.0
        %1047 = vmatprep.subr.mxu0 0.0
        %1048 = vmatpush1.msra.mxu0 0.0
        %1049 = vmatprep.subr.mxu0 0.0
        %1050 = vmatpush1.msra.mxu0 0.0
        %1051 = vmatprep.subr.mxu0 0.0
        %1052 = vmatpush1.msra.mxu0 0.0
        %1053 = vmatprep.subr.mxu0 0.0
        %1054 = vmatpush1.msra.mxu0 0.0
        %1055 = vmatprep.subr.mxu0 0.0
        %1056 = vmatpush1.msra.mxu0 0.0
        %1057 = vmatprep.subr.mxu0 0.0
        %1058 = vmatpush1.msra.mxu0 0.0
        %1059 = vmatprep.subr.mxu0 0.0
        %1060 = vmatpush1.msra.mxu0 0.0
        %1061 = vmatprep.subr.mxu0 0.0
        %1062 = vmatpush1.msra.mxu0 0.0
        %1063 = vmatprep.subr.mxu0 0.0
        %1064 = vmatpush1.msra.mxu0 0.0
        %1065 = vmatprep.subr.mxu0 0.0
        %1066 = vmatpush1.msra.mxu0 0.0
        %1067 = vmatprep.subr.mxu0 0.0
        %1068 = vmatpush1.msra.mxu0 0.0
        %1069 = vmatprep.mubr.f32.mxu0 0.0
        %1070 = vmatmul.mubr.f32.gmra.mrb[0].mxu0 %v861
        %v1071 = vpop.f32.mrb[0].mxu0
        %v1072 = vadd.f32 %v857, %v1071
        %v1073 = vpop.f32.mrb[0].mxu0
        %1074 = vdwg.mxu0
        %v1075 = vmax.f32 %v930, 0.0
        %v1076 = vmax.f32 %v932, 0.0
        %v1077 = vmax.f32 %v1001, 0.0
        %v1078 = vmax.f32 %v1003, 0.0
        %v1079 = vmax.f32 %v1072, 0.0
        %v1080 = vld [vmem:[%s5] sm:$0xf]
        %v1081 = vld [vmem:[%s6] sm:$0xf]
        %1083 = vset.pattern.permute.xlu0 0
        %1084 = vperm.xlu0 %1083, %v1081
        %v1085 = vpop.permute.xlu0 %1084
        %v1088 = vsel %vm859, %v1080, 0
        %1090 = vmatprep.subr.mxu0 %v1076
        %1091 = vmatpush1.msra.mxu0 %v1075
        %1092 = vmatprep.subr.mxu0 0.0
        %1093 = vmatpush1.msra.mxu0 0.0
        %1094 = vmatprep.subr.mxu0 0.0
        %1095 = vmatpush1.msra.mxu0 0.0
        %1096 = vmatprep.subr.mxu0 0.0
        %1097 = vmatpush1.msra.mxu0 0.0
        %1098 = vmatprep.subr.mxu0 0.0
        %1099 = vmatpush1.msra.mxu0 0.0
        %1100 = vmatprep.subr.mxu0 0.0
        %1101 = vmatpush1.msra.mxu0 0.0
        %1102 = vmatprep.subr.mxu0 0.0
        %1103 = vmatpush1.msra.mxu0 0.0
        %1104 = vmatprep.subr.mxu0 0.0
        %1105 = vmatpush1.msra.mxu0 0.0
        %1106 = vmatprep.subr.mxu0 0.0
        %1107 = vmatpush1.msra.mxu0 0.0
        %1108 = vmatprep.subr.mxu0 0.0
        %1109 = vmatpush1.msra.mxu0 0.0
        %1110 = vmatprep.subr.mxu0 0.0
        %1111 = vmatpush1.msra.mxu0 0.0
        %1112 = vmatprep.subr.mxu0 0.0
        %1113 = vmatpush1.msra.mxu0 0.0
        %1114 = vmatprep.subr.mxu0 0.0
        %1115 = vmatpush1.msra.mxu0 0.0
        %1116 = vmatprep.subr.mxu0 0.0
        %1117 = vmatpush1.msra.mxu0 0.0
        %1118 = vmatprep.subr.mxu0 0.0
        %1119 = vmatpush1.msra.mxu0 0.0
        %1120 = vmatprep.subr.mxu0 0.0
        %1121 = vmatpush1.msra.mxu0 0.0
        %1122 = vmatprep.subr.mxu0 0.0
        %1123 = vmatpush1.msra.mxu0 0.0
        %1124 = vmatprep.subr.mxu0 0.0
        %1125 = vmatpush1.msra.mxu0 0.0
        %1126 = vmatprep.subr.mxu0 0.0
        %1127 = vmatpush1.msra.mxu0 0.0
        %1128 = vmatprep.subr.mxu0 0.0
        %1129 = vmatpush1.msra.mxu0 0.0
        %1130 = vmatprep.subr.mxu0 0.0
        %1131 = vmatpush1.msra.mxu0 0.0
        %1132 = vmatprep.subr.mxu0 0.0
        %1133 = vmatpush1.msra.mxu0 0.0
        %1134 = vmatprep.subr.mxu0 0.0
        %1135 = vmatpush1.msra.mxu0 0.0
        %1136 = vmatprep.subr.mxu0 0.0
        %1137 = vmatpush1.msra.mxu0 0.0
        %1138 = vmatprep.subr.mxu0 0.0
        %1139 = vmatpush1.msra.mxu0 0.0
        %1140 = vmatprep.subr.mxu0 0.0
        %1141 = vmatpush1.msra.mxu0 0.0
        %1142 = vmatprep.subr.mxu0 0.0
        %1143 = vmatpush1.msra.mxu0 0.0
        %1144 = vmatprep.subr.mxu0 0.0
        %1145 = vmatpush1.msra.mxu0 0.0
        %1146 = vmatprep.subr.mxu0 0.0
        %1147 = vmatpush1.msra.mxu0 0.0
        %1148 = vmatprep.subr.mxu0 0.0
        %1149 = vmatpush1.msra.mxu0 0.0
        %1150 = vmatprep.subr.mxu0 0.0
        %1151 = vmatpush1.msra.mxu0 0.0
        %1152 = vmatprep.subr.mxu0 0.0
        %1153 = vmatpush1.msra.mxu0 0.0
        %1154 = vmatprep.mubr.f32.mxu0 0.0
        %1155 = vmatmul.mubr.f32.gmra.mrb[0].mxu0 %v1088
        %v1156 = vpop.f32.mrb[0].mxu0
        %v1157 = vadd.f32 %v1085, %v1156
        %v1158 = vpop.f32.mrb[0].mxu0
        %v1159 = vadd.f32 %v1085, %v1158
        %1160 = vdwg.mxu0
        %1161 = vmatprep.subr.mxu0 %v1078
        %1162 = vmatpush1.msra.mxu0 %v1077
        %1163 = vmatprep.subr.mxu0 0.0
        %1164 = vmatpush1.msra.mxu0 0.0
        %1165 = vmatprep.subr.mxu0 0.0
        %1166 = vmatpush1.msra.mxu0 0.0
        %1167 = vmatprep.subr.mxu0 0.0
        %1168 = vmatpush1.msra.mxu0 0.0
        %1169 = vmatprep.subr.mxu0 0.0
        %1170 = vmatpush1.msra.mxu0 0.0
        %1171 = vmatprep.subr.mxu0 0.0
        %1172 = vmatpush1.msra.mxu0 0.0
        %1173 = vmatprep.subr.mxu0 0.0
        %1174 = vmatpush1.msra.mxu0 0.0
        %1175 = vmatprep.subr.mxu0 0.0
        %1176 = vmatpush1.msra.mxu0 0.0
        %1177 = vmatprep.subr.mxu0 0.0
        %1178 = vmatpush1.msra.mxu0 0.0
        %1179 = vmatprep.subr.mxu0 0.0
        %1180 = vmatpush1.msra.mxu0 0.0
        %1181 = vmatprep.subr.mxu0 0.0
        %1182 = vmatpush1.msra.mxu0 0.0
        %1183 = vmatprep.subr.mxu0 0.0
        %1184 = vmatpush1.msra.mxu0 0.0
        %1185 = vmatprep.subr.mxu0 0.0
        %1186 = vmatpush1.msra.mxu0 0.0
        %1187 = vmatprep.subr.mxu0 0.0
        %1188 = vmatpush1.msra.mxu0 0.0
        %1189 = vmatprep.subr.mxu0 0.0
        %1190 = vmatpush1.msra.mxu0 0.0
        %1191 = vmatprep.subr.mxu0 0.0
        %1192 = vmatpush1.msra.mxu0 0.0
        %1193 = vmatprep.subr.mxu0 0.0
        %1194 = vmatpush1.msra.mxu0 0.0
        %1195 = vmatprep.subr.mxu0 0.0
        %1196 = vmatpush1.msra.mxu0 0.0
        %1197 = vmatprep.subr.mxu0 0.0
        %1198 = vmatpush1.msra.mxu0 0.0
        %1199 = vmatprep.subr.mxu0 0.0
        %1200 = vmatpush1.msra.mxu0 0.0
        %1201 = vmatprep.subr.mxu0 0.0
        %1202 = vmatpush1.msra.mxu0 0.0
        %1203 = vmatprep.subr.mxu0 0.0
        %1204 = vmatpush1.msra.mxu0 0.0
        %1205 = vmatprep.subr.mxu0 0.0
        %1206 = vmatpush1.msra.mxu0 0.0
        %1207 = vmatprep.subr.mxu0 0.0
        %1208 = vmatpush1.msra.mxu0 0.0
        %1209 = vmatprep.subr.mxu0 0.0
        %1210 = vmatpush1.msra.mxu0 0.0
        %1211 = vmatprep.subr.mxu0 0.0
        %1212 = vmatpush1.msra.mxu0 0.0
        %1213 = vmatprep.subr.mxu0 0.0
        %1214 = vmatpush1.msra.mxu0 0.0
        %1215 = vmatprep.subr.mxu0 0.0
        %1216 = vmatpush1.msra.mxu0 0.0
        %1217 = vmatprep.subr.mxu0 0.0
        %1218 = vmatpush1.msra.mxu0 0.0
        %1219 = vmatprep.subr.mxu0 0.0
        %1220 = vmatpush1.msra.mxu0 0.0
        %1221 = vmatprep.subr.mxu0 0.0
        %1222 = vmatpush1.msra.mxu0 0.0
        %1223 = vmatprep.subr.mxu0 0.0
        %1224 = vmatpush1.msra.mxu0 0.0
        %1225 = vmatprep.mubr.f32.mxu0 0.0
        %1226 = vmatmul.mubr.f32.gmra.mrb[0].mxu0 %v1088
        %v1227 = vpop.f32.mrb[0].mxu0
        %v1228 = vadd.f32 %v1085, %v1227
        %v1229 = vpop.f32.mrb[0].mxu0
        %v1230 = vadd.f32 %v1085, %v1229
        %1231 = vdwg.mxu0
        %1232 = vmatprep.subr.mxu0 0.0
        %1233 = vmatpush1.msra.mxu0 %v1079
        %1234 = vmatprep.subr.mxu0 0.0
        %1235 = vmatpush1.msra.mxu0 0.0
        %1236 = vmatprep.subr.mxu0 0.0
        %1237 = vmatpush1.msra.mxu0 0.0
        %1238 = vmatprep.subr.mxu0 0.0
        %1239 = vmatpush1.msra.mxu0 0.0
        %1240 = vmatprep.subr.mxu0 0.0
        %1241 = vmatpush1.msra.mxu0 0.0
        %1242 = vmatprep.subr.mxu0 0.0
        %1243 = vmatpush1.msra.mxu0 0.0
        %1244 = vmatprep.subr.mxu0 0.0
        %1245 = vmatpush1.msra.mxu0 0.0
        %1246 = vmatprep.subr.mxu0 0.0
        %1247 = vmatpush1.msra.mxu0 0.0
        %1248 = vmatprep.subr.mxu0 0.0
        %1249 = vmatpush1.msra.mxu0 0.0
        %1250 = vmatprep.subr.mxu0 0.0
        %1251 = vmatpush1.msra.mxu0 0.0
        %1252 = vmatprep.subr.mxu0 0.0
        %1253 = vmatpush1.msra.mxu0 0.0
        %1254 = vmatprep.subr.mxu0 0.0
        %1255 = vmatpush1.msra.mxu0 0.0
        %1256 = vmatprep.subr.mxu0 0.0
        %1257 = vmatpush1.msra.mxu0 0.0
        %1258 = vmatprep.subr.mxu0 0.0
        %1259 = vmatpush1.msra.mxu0 0.0
        %1260 = vmatprep.subr.mxu0 0.0
        %1261 = vmatpush1.msra.mxu0 0.0
        %1262 = vmatprep.subr.mxu0 0.0
        %1263 = vmatpush1.msra.mxu0 0.0
        %1264 = vmatprep.subr.mxu0 0.0
        %1265 = vmatpush1.msra.mxu0 0.0
        %1266 = vmatprep.subr.mxu0 0.0
        %1267 = vmatpush1.msra.mxu0 0.0
        %1268 = vmatprep.subr.mxu0 0.0
        %1269 = vmatpush1.msra.mxu0 0.0
        %1270 = vmatprep.subr.mxu0 0.0
        %1271 = vmatpush1.msra.mxu0 0.0
        %1272 = vmatprep.subr.mxu0 0.0
        %1273 = vmatpush1.msra.mxu0 0.0
        %1274 = vmatprep.subr.mxu0 0.0
        %1275 = vmatpush1.msra.mxu0 0.0
        %1276 = vmatprep.subr.mxu0 0.0
        %1277 = vmatpush1.msra.mxu0 0.0
        %1278 = vmatprep.subr.mxu0 0.0
        %1279 = vmatpush1.msra.mxu0 0.0
        %1280 = vmatprep.subr.mxu0 0.0
        %1281 = vmatpush1.msra.mxu0 0.0
        %1282 = vmatprep.subr.mxu0 0.0
        %1283 = vmatpush1.msra.mxu0 0.0
        %1284 = vmatprep.subr.mxu0 0.0
        %1285 = vmatpush1.msra.mxu0 0.0
        %1286 = vmatprep.subr.mxu0 0.0
        %1287 = vmatpush1.msra.mxu0 0.0
        %1288 = vmatprep.subr.mxu0 0.0
        %1289 = vmatpush1.msra.mxu0 0.0
        %1290 = vmatprep.subr.mxu0 0.0
        %1291 = vmatpush1.msra.mxu0 0.0
        %1292 = vmatprep.subr.mxu0 0.0
        %1293 = vmatpush1.msra.mxu0 0.0
        %1294 = vmatprep.subr.mxu0 0.0
        %1295 = vmatpush1.msra.mxu0 0.0
        %1296 = vmatprep.mubr.f32.mxu0 0.0
        %1297 = vmatmul.mubr.f32.gmra.mrb[0].mxu0 %v1088
        %v1298 = vpop.f32.mrb[0].mxu0
        %v1299 = vadd.f32 %v1085, %v1298
        %v1300 = vpop.f32.mrb[0].mxu0
        %1301 = vdwg.mxu0
        %v1306 = vcombine.low %v1157, %v1159
        %v1307 = vcombine.low %v1228, %v1230
        %1310 = vst [vmem:[%s284] sm:$0xff] %v1306
        %1311 = vst [vmem:[%s284 + $0x8] sm:$0xff] %v1307
        %1312 = vst [vmem:[%s284 + $0x10] sm:$0xf] %v1299
        %s1313 = sand.u32 %s181, 1
        %s1314 = scalar_lea.sflag [#allocation3], %s1313
        %s1315 = sand.u32 %s181, 1
        %s1316 = smul.addr %s1315, 20
        %s1317 = scalar_lea.vmem [#allocation2], %s1316
        // Predicated region
        $region49: #{tpu_custom_call.1} parent=47 // pred_check
          %p1318 = pneg %p191
        $region50: #{tpu_custom_call.1} parent=47 // pred_check_branch
          %1320 = sbr.rel (%p1318) target = $region52
        $region51: #{tpu_custom_call.1} parent=47 // pred_region
          %s1321 = smul.u32 5, %s21
          %s1322 = ssub.s32 17, %s1321
          %p1323 = scmp.lt.s32.totalorder %s1322, 5
          %s1324 = scalar_select %p1323, %s1322, 5
          %s1325 = smul.u32 64, %s1324
          %s1327 = ssub.s32 320, %s1325
          %1328 = vsyncadd %s1314, %s1327
          %p1329 = scmp.ne.s32.totalorder 0, %s1325
          %s1330 = smul.addr %s1321, 64
          %s1331 = scalar_lea.hbm %s7, %s1330
          %s1332 = smul.u32 %s1324, 4
          %s1333 = sshll.u32 %s1332, 4
          %s1334 = sshll.u32 %s1317, 4
          %s1335 = int_to_ptr.vmem [resolvable:$true] %s1334
          %1337 = dma.vmem_to_hbm [thread:$0]  (%p1329), %s1335, %s1333, %s1331, %s1314
        $region52: #{tpu_custom_call.1} parent=47 // pred_fallthru
          _
      $region48: #{tpu_custom_call.1} parent=5 // pred_fallthru
        _
      %p1338 = scmp.le.s32.totalorder 2, %s16
      // Predicated region
      $region53: #{tpu_custom_call.1} parent=5 // pred_check
        %p1339 = pneg %p1338
      $region54: #{tpu_custom_call.1} parent=5 // pred_check_branch
        %1341 = sbr.rel (%p1339) target = $region56
      $region55: #{tpu_custom_call.1} parent=5 // pred_region
        %s1342 = ssub.s32 %s16, 2
        // Predicated region
        $region57: #{tpu_custom_call.1} parent=55 // pred_check
          %p1343 = pneg %p197
        $region58: #{tpu_custom_call.1} parent=55 // pred_check_branch
          %1345 = sbr.rel (%p1343) target = $region60
        $region59: #{tpu_custom_call.1} parent=55 // pred_region
          %s1346 = sand.u32 %s182, 1
          %s1347 = scalar_lea.sflag [#allocation3], %s1346
          %s1348 = sand.u32 %s182, 1
          %s1349 = smul.addr %s1348, 20
          %s1350 = scalar_lea.vmem [#allocation2], %s1349
          %1351 = dma.done %s1347, 320
        $region60: #{tpu_custom_call.1} parent=55 // pred_fallthru
          _
      $region56: #{tpu_custom_call.1} parent=5 // pred_fallthru
        _
    $region6: #{tpu_custom_call.1} parent=1 // loop_footer
      %s20 = sadd.s32 1, %s16
    $region7: #{tpu_custom_call.1} parent=1 // loop_footer_branch
      %15 = sbr.rel target = $region3
    $region8: #{tpu_custom_call.1} parent=1 // loop_exit
      _
    %1352 = vsyncpa [#allocation3], 1
    %s1353 = scalar_lea.sflag [#allocation3], 1
    %1354 = vsyncpa %s1353, 1

</llo_original>
